<compile_context>
chip_gen: v7x
topology: tpu7x:2x2x1
jax: 0.10.0
libtpu: 0.0.40
codegen_flags: <defaults>
</compile_context>

<pallas_src>
import math
import functools

import jax
import jax.numpy as jnp
from jax.experimental import pallas as pl
from jax.experimental.pallas import tpu as pltpu


def _round_up(x, n):
    return ((x + n - 1) // n) * n


def _choose_tile(dim, align, cap):
    """Return (tile, padded_dim): tile % align == 0, padded_dim % tile == 0."""
    padded = _round_up(dim, align)
    if padded <= cap:
        return padded, padded
    return cap, _round_up(dim, cap)  # cap is a multiple of align


def _pick_caps(dim3, in_bytes, out_bytes, budget_bytes):
    """Pick (TO, TM, TK) caps so the double-buffered per-step VMEM footprint fits."""
    candidates = [
        (512, 512, 1024), (512, 512, 512), (256, 512, 512), (256, 256, 512),
        (256, 256, 256), (128, 256, 256), (128, 128, 256), (128, 128, 128),
        (64, 128, 128), (32, 128, 128), (16, 128, 128),
    ]
    for to, tm, tk in candidates:
        fp = dim3 * (2 * in_bytes * (to * tk + tk * tm)     # W + X, double-buffered
                     + 2 * out_bytes * to * tm               # output, double-buffered
                     + 4 * to * tm)                           # f32 accumulator
        if fp <= budget_bytes:
            return to, tm, tk
    return candidates[-1]


def _t_facewise_kernel(minv_ref, w_ref, x_ref, o_ref, acc_ref, *, dim3):
    """Grid step (i, j, k): for every face d accumulate
         acc[d] += W_hat[d, i-tile, k-tile] @ X_hat[d, k-tile, j-tile]   (MXU, f32 acc)
    and on the last k step apply the inverse mode-3 transform
         out[l] = sum_d Minv[l, d] * acc[d]
    writing the (dim3, TO, TM) output tile in the target dtype."""
    k = pl.program_id(2)

    @pl.when(k == 0)
    def _():
        acc_ref[...] = jnp.zeros_like(acc_ref)

    for d in range(dim3):
        acc_ref[d] += jnp.dot(w_ref[d], x_ref[d], preferred_element_type=jnp.float32)

    @pl.when(k == pl.num_programs(2) - 1)
    def _():
        for l in range(dim3):
            y = acc_ref[0] * minv_ref[l, 0]
            for d in range(1, dim3):
                y = y + acc_ref[d] * minv_ref[l, d]
            o_ref[l] = y.astype(o_ref.dtype)


def t_linear_forward(x, weight, bias=None, M=None, activation=None,
                     orthonormal_M=False, compute_dtype=jnp.bfloat16):
    """x: (in_features, m, dim3); weight: (O, in_features, dim3); bias: (O, 1, dim3) or None.
    Returns (O, m, dim3), matching the PyTorch module's forward.
    orthonormal_M=True uses M.T as the inverse transform (valid only for orthogonal M)."""
    O, I, dim3 = weight.shape
    I2, m, d3 = x.shape
    assert I2 == I and d3 == dim3
    out_dtype = x.dtype

    # --- glue: forward mode-3 transform, cast to MXU dtype, face-major layout ---
    if M is None:
        w_hat = jnp.transpose(weight, (2, 0, 1)).astype(compute_dtype)   # (dim3, O, I)
        x_hat = jnp.transpose(x, (2, 0, 1)).astype(compute_dtype)        # (dim3, I, m)
        minv = jnp.eye(dim3, dtype=jnp.float32)
    else:
        M32 = M.astype(jnp.float32)
        w_hat = jnp.einsum("dk,oik->doi", M32,
                           weight.astype(jnp.float32)).astype(compute_dtype)
        x_hat = jnp.einsum("dk,imk->dim", M32,
                           x.astype(jnp.float32)).astype(compute_dtype)
        minv = M32.T if orthonormal_M else jnp.linalg.inv(M32)

    # --- tiling: lane-dense last dims, 16-aligned sublanes, VMEM-budgeted caps ---
    in_bytes = jnp.dtype(compute_dtype).itemsize
    out_bytes = jnp.dtype(out_dtype).itemsize
    to_cap, tm_cap, tk_cap = _pick_caps(dim3, in_bytes, out_bytes, budget_bytes=36 << 20)

    TO, O_pad = _choose_tile(O, 16, to_cap)
    TM, m_pad = _choose_tile(m, 128, tm_cap)
    TK, I_pad = _choose_tile(I, 128, tk_cap)

    if (O_pad, I_pad) != (O, I):
        w_hat = jnp.pad(w_hat, ((0, 0), (0, O_pad - O), (0, I_pad - I)))
    if (I_pad, m_pad) != (I, m):
        x_hat = jnp.pad(x_hat, ((0, 0), (0, I_pad - I), (0, m_pad - m)))

    grid = (O_pad // TO, m_pad // TM, I_pad // TK)

    kernel = functools.partial(_t_facewise_kernel, dim3=dim3)

    y_t = pl.pallas_call(
        kernel,
        out_shape=jax.ShapeDtypeStruct((dim3, O_pad, m_pad), out_dtype),
        grid=grid,
        in_specs=[
            pl.BlockSpec(memory_space=pltpu.MemorySpace.SMEM),            # Minv (dim3, dim3)
            pl.BlockSpec((dim3, TO, TK), lambda i, j, k: (0, i, k)),      # W_hat tile
            pl.BlockSpec((dim3, TK, TM), lambda i, j, k: (0, k, j)),      # X_hat tile
        ],
        out_specs=pl.BlockSpec((dim3, TO, TM), lambda i, j, k: (0, i, j)),
        scratch_shapes=[pltpu.VMEM((dim3, TO, TM), jnp.float32)],
        compiler_params=pltpu.CompilerParams(
            dimension_semantics=("parallel", "parallel", "arbitrary"),
            vmem_limit_bytes=48 << 20,
        ),
    )(minv, w_hat, x_hat)

    # --- glue: trim padding, transpose to (O, m, dim3), bias, activation (one fusion) ---
    y = jnp.transpose(y_t[:, :O, :m], (1, 2, 0))
    if bias is not None:
        y = y + bias
    if activation is not None:
        if callable(activation):
            y = activation(y)
        elif activation == "relu":
            y = jnp.maximum(y, 0.0)
        else:
            raise ValueError(f"unsupported activation: {activation!r}")
    return y.astype(out_dtype)


def t_linear_ref(x, weight, bias=None, M=None, activation=None):
    """Pure-JAX (f32) reference of the same forward pass."""
    dim3 = weight.shape[-1]
    if M is None:
        M = jnp.eye(dim3, dtype=jnp.float32)
    Minv = jnp.linalg.inv(M)
    w_hat = jnp.einsum("dk,oik->oid", M, weight)
    x_hat = jnp.einsum("dk,imk->imd", M, x)
    c_hat = jnp.einsum("oid,imd->omd", w_hat, x_hat)
    y = jnp.einsum("ld,omd->oml", Minv, c_hat)
    if bias is not None:
        y = y + bias
    if activation == "relu":
        y = jnp.maximum(y, 0.0)
    return y


if __name__ == "__main__":
    in_features, out_features, dim3, m = 32, 16, 4, 8

    key = jax.random.PRNGKey(0)
    kw, kb, kx = jax.random.split(key, 3)

    # weight ~ kaiming_uniform_(a=sqrt(5)) on (O, I, dim3): fan_in = I*dim3
    bound_w = 1.0 / math.sqrt(in_features * dim3)
    weight = jax.random.uniform(
        kw, (out_features, in_features, dim3), jnp.float32, -bound_w, bound_w)

    # bias bound from fan_in of weight.permute(1,0,2) -> out_features*dim3
    bound_b = 1.0 / math.sqrt(out_features * dim3)
    bias = jax.random.uniform(
        kb, (out_features, 1, dim3), jnp.float32, -bound_b, bound_b)

    x = jax.random.normal(kx, (in_features, m, dim3), jnp.float32)

    # Deterministic orthonormal DCT-II transform matrix M (dim3 x dim3)
    n = dim3
    kk = jnp.arange(n, dtype=jnp.float32)
    dd = jnp.arange(n, dtype=jnp.float32)[:, None]
    M = jnp.sqrt(2.0 / n) * jnp.cos(jnp.pi * (kk[None, :] + 0.5) * dd / n)
    M = M.at[0].multiply(1.0 / jnp.sqrt(2.0))

    ref = t_linear_ref(x, weight, bias, M, activation="relu")

    # 1) f32 compute path: exact structural check of the fused kernel.
    out_f32 = t_linear_forward(x, weight, bias, M, activation="relu",
                               orthonormal_M=True, compute_dtype=jnp.float32)
    out_f32 = jax.block_until_ready(out_f32)
    assert out_f32.shape == (out_features, m, dim3), out_f32.shape
    err = float(jnp.max(jnp.abs(out_f32 - ref)))
    assert jnp.allclose(out_f32, ref, atol=1e-4, rtol=1e-4), err

    # 2) bf16 compute path (the performance default): looser tolerance vs f32 reference.
    out_bf16 = t_linear_forward(x, weight, bias, M, activation="relu",
                                orthonormal_M=True)  # compute_dtype=bf16
    out_bf16 = jax.block_until_ready(out_bf16)
    err_bf16 = float(jnp.max(jnp.abs(out_bf16 - ref)))
    assert jnp.allclose(out_bf16, ref, atol=5e-2, rtol=5e-2), err_bf16

    # 3) Identity-transform path (M=None), no bias / activation, f32 compute.
    out_id = jax.block_until_ready(
        t_linear_forward(x, weight, None, None, None, compute_dtype=jnp.float32))
    ref_id = t_linear_ref(x, weight, None, None, None)
    err_id = float(jnp.max(jnp.abs(out_id - ref_id)))
    assert jnp.allclose(out_id, ref_id, atol=1e-4, rtol=1e-4), err_id

    print("KERNEL_OK")
</pallas_src>

<mosaic_0001>
module attributes {stable_mosaic.version = 11 : i64} {
  func.func @_t_facewise_kernel(%arg0: i32, %arg1: i32, %arg2: i32, %arg3: memref<4x4xf32, #tpu.memory_space<smem>>, %arg4: memref<4x16x128xf32, #tpu.memory_space<vmem>>, %arg5: memref<4x128x128xf32, #tpu.memory_space<vmem>>, %arg6: memref<4x16x128xf32, #tpu.memory_space<vmem>>, %arg7: memref<4x16x128xf32, #tpu.memory_space<vmem>>) attributes {dimension_semantics = [#tpu.dimension_semantics<parallel>, #tpu.dimension_semantics<parallel>, #tpu.dimension_semantics<arbitrary>], iteration_bounds = array<i64: 1, 1, 1>, scalar_prefetch = 0 : i64, scratch_operands = 1 : i64, tpu.core_type = #tpu.core_type<tc>, window_params = [{transform_indices = @transform_0, window_bounds = array<i64: 4, 4>}, {transform_indices = @transform_1, window_bounds = array<i64: 4, 16, 128>}, {transform_indices = @transform_2, window_bounds = array<i64: 4, 128, 128>}, {transform_indices = @transform_3, window_bounds = array<i64: 4, 16, 128>}]} {
    %c0_i32 = arith.constant 0 : i32
    %0 = arith.cmpi eq, %arg2, %c0_i32 : i32
    %1 = arith.extui %0 : i1 to i32
    %c0_i32_0 = arith.constant 0 : i32
    %2 = arith.cmpi ne, %1, %c0_i32_0 : i32
    scf.if %2 {
      %cst_50 = arith.constant 0.000000e+00 : f32
      %50 = vector.broadcast %cst_50 : f32 to vector<4x16x128xf32>
      %c0_51 = arith.constant 0 : index
      %c0_52 = arith.constant 0 : index
      %c0_53 = arith.constant 0 : index
      %51 = vector.load %arg7[%c0_51, %c0_52, %c0_53] : memref<4x16x128xf32, #tpu.memory_space<vmem>>, vector<4x16x128xf32>
      tpu.vector_store %arg7[%c0_51, %c0_52, %c0_53], %50 {strides = array<i32>} : memref<4x16x128xf32, #tpu.memory_space<vmem>>, vector<4x16x128xf32>,
    } else {
    }
    %c0 = arith.constant 0 : index
    %c0_1 = arith.constant 0 : index
    %c0_2 = arith.constant 0 : index
    %3 = vector.load %arg7[%c0, %c0_1, %c0_2] : memref<4x16x128xf32, #tpu.memory_space<vmem>>, vector<1x16x128xf32>
    %4 = vector.shape_cast %3 : vector<1x16x128xf32> to vector<16x128xf32>
    %c0_3 = arith.constant 0 : index
    %c0_4 = arith.constant 0 : index
    %c0_5 = arith.constant 0 : index
    %5 = vector.load %arg4[%c0_3, %c0_4, %c0_5] : memref<4x16x128xf32, #tpu.memory_space<vmem>>, vector<1x16x128xf32>
    %6 = vector.shape_cast %5 : vector<1x16x128xf32> to vector<16x128xf32>
    %c0_6 = arith.constant 0 : index
    %c0_7 = arith.constant 0 : index
    %c0_8 = arith.constant 0 : index
    %7 = vector.load %arg5[%c0_6, %c0_7, %c0_8] : memref<4x128x128xf32, #tpu.memory_space<vmem>>, vector<1x128x128xf32>
    %8 = vector.shape_cast %7 : vector<1x128x128xf32> to vector<128x128xf32>
    %cst = arith.constant dense<0.000000e+00> : vector<16x128xf32>
    %9 = tpu.matmul %6, %8, %cst {dimension_numbers = #tpu.dot_dimension_numbers<[1], [0], [0], [1], [0, 0, 1, 1], [], []>} : vector<16x128xf32>, vector<128x128xf32>, vector<16x128xf32> -> vector<16x128xf32>
    %10 = arith.addf %4, %9 : vector<16x128xf32>
    %c0_9 = arith.constant 0 : index
    %c0_10 = arith.constant 0 : index
    %c0_11 = arith.constant 0 : index
    %11 = vector.load %arg7[%c0_9, %c0_10, %c0_11] : memref<4x16x128xf32, #tpu.memory_space<vmem>>, vector<1x16x128xf32>
    %12 = vector.shape_cast %11 : vector<1x16x128xf32> to vector<16x128xf32>
    %13 = vector.shape_cast %10 : vector<16x128xf32> to vector<1x16x128xf32>
    tpu.vector_store %arg7[%c0_9, %c0_10, %c0_11], %13 {strides = array<i32>} : memref<4x16x128xf32, #tpu.memory_space<vmem>>, vector<1x16x128xf32>,
    %c1 = arith.constant 1 : index
    %c0_12 = arith.constant 0 : index
    %c0_13 = arith.constant 0 : index
    %14 = vector.load %arg7[%c1, %c0_12, %c0_13] : memref<4x16x128xf32, #tpu.memory_space<vmem>>, vector<1x16x128xf32>
    %15 = vector.shape_cast %14 : vector<1x16x128xf32> to vector<16x128xf32>
    %c1_14 = arith.constant 1 : index
    %c0_15 = arith.constant 0 : index
    %c0_16 = arith.constant 0 : index
    %16 = vector.load %arg4[%c1_14, %c0_15, %c0_16] : memref<4x16x128xf32, #tpu.memory_space<vmem>>, vector<1x16x128xf32>
    %17 = vector.shape_cast %16 : vector<1x16x128xf32> to vector<16x128xf32>
    %c1_17 = arith.constant 1 : index
    %c0_18 = arith.constant 0 : index
    %c0_19 = arith.constant 0 : index
    %18 = vector.load %arg5[%c1_17, %c0_18, %c0_19] : memref<4x128x128xf32, #tpu.memory_space<vmem>>, vector<1x128x128xf32>
    %19 = vector.shape_cast %18 : vector<1x128x128xf32> to vector<128x128xf32>
    %cst_20 = arith.constant dense<0.000000e+00> : vector<16x128xf32>
    %20 = tpu.matmul %17, %19, %cst_20 {dimension_numbers = #tpu.dot_dimension_numbers<[1], [0], [0], [1], [0, 0, 1, 1], [], []>} : vector<16x128xf32>, vector<128x128xf32>, vector<16x128xf32> -> vector<16x128xf32>
    %21 = arith.addf %15, %20 : vector<16x128xf32>
    %c1_21 = arith.constant 1 : index
    %c0_22 = arith.constant 0 : index
    %c0_23 = arith.constant 0 : index
    %22 = vector.load %arg7[%c1_21, %c0_22, %c0_23] : memref<4x16x128xf32, #tpu.memory_space<vmem>>, vector<1x16x128xf32>
    %23 = vector.shape_cast %22 : vector<1x16x128xf32> to vector<16x128xf32>
    %24 = vector.shape_cast %21 : vector<16x128xf32> to vector<1x16x128xf32>
    tpu.vector_store %arg7[%c1_21, %c0_22, %c0_23], %24 {strides = array<i32>} : memref<4x16x128xf32, #tpu.memory_space<vmem>>, vector<1x16x128xf32>,
    %c2 = arith.constant 2 : index
    %c0_24 = arith.constant 0 : index
    %c0_25 = arith.constant 0 : index
    %25 = vector.load %arg7[%c2, %c0_24, %c0_25] : memref<4x16x128xf32, #tpu.memory_space<vmem>>, vector<1x16x128xf32>
    %26 = vector.shape_cast %25 : vector<1x16x128xf32> to vector<16x128xf32>
    %c2_26 = arith.constant 2 : index
    %c0_27 = arith.constant 0 : index
    %c0_28 = arith.constant 0 : index
    %27 = vector.load %arg4[%c2_26, %c0_27, %c0_28] : memref<4x16x128xf32, #tpu.memory_space<vmem>>, vector<1x16x128xf32>
    %28 = vector.shape_cast %27 : vector<1x16x128xf32> to vector<16x128xf32>
    %c2_29 = arith.constant 2 : index
    %c0_30 = arith.constant 0 : index
    %c0_31 = arith.constant 0 : index
    %29 = vector.load %arg5[%c2_29, %c0_30, %c0_31] : memref<4x128x128xf32, #tpu.memory_space<vmem>>, vector<1x128x128xf32>
    %30 = vector.shape_cast %29 : vector<1x128x128xf32> to vector<128x128xf32>
    %cst_32 = arith.constant dense<0.000000e+00> : vector<16x128xf32>
    %31 = tpu.matmul %28, %30, %cst_32 {dimension_numbers = #tpu.dot_dimension_numbers<[1], [0], [0], [1], [0, 0, 1, 1], [], []>} : vector<16x128xf32>, vector<128x128xf32>, vector<16x128xf32> -> vector<16x128xf32>
    %32 = arith.addf %26, %31 : vector<16x128xf32>
    %c2_33 = arith.constant 2 : index
    %c0_34 = arith.constant 0 : index
    %c0_35 = arith.constant 0 : index
    %33 = vector.load %arg7[%c2_33, %c0_34, %c0_35] : memref<4x16x128xf32, #tpu.memory_space<vmem>>, vector<1x16x128xf32>
    %34 = vector.shape_cast %33 : vector<1x16x128xf32> to vector<16x128xf32>
    %35 = vector.shape_cast %32 : vector<16x128xf32> to vector<1x16x128xf32>
    tpu.vector_store %arg7[%c2_33, %c0_34, %c0_35], %35 {strides = array<i32>} : memref<4x16x128xf32, #tpu.memory_space<vmem>>, vector<1x16x128xf32>,
    %c3 = arith.constant 3 : index
    %c0_36 = arith.constant 0 : index
    %c0_37 = arith.constant 0 : index
    %36 = vector.load %arg7[%c3, %c0_36, %c0_37] : memref<4x16x128xf32, #tpu.memory_space<vmem>>, vector<1x16x128xf32>
    %37 = vector.shape_cast %36 : vector<1x16x128xf32> to vector<16x128xf32>
    %c3_38 = arith.constant 3 : index
    %c0_39 = arith.constant 0 : index
    %c0_40 = arith.constant 0 : index
    %38 = vector.load %arg4[%c3_38, %c0_39, %c0_40] : memref<4x16x128xf32, #tpu.memory_space<vmem>>, vector<1x16x128xf32>
    %39 = vector.shape_cast %38 : vector<1x16x128xf32> to vector<16x128xf32>
    %c3_41 = arith.constant 3 : index
    %c0_42 = arith.constant 0 : index
    %c0_43 = arith.constant 0 : index
    %40 = vector.load %arg5[%c3_41, %c0_42, %c0_43] : memref<4x128x128xf32, #tpu.memory_space<vmem>>, vector<1x128x128xf32>
    %41 = vector.shape_cast %40 : vector<1x128x128xf32> to vector<128x128xf32>
    %cst_44 = arith.constant dense<0.000000e+00> : vector<16x128xf32>
    %42 = tpu.matmul %39, %41, %cst_44 {dimension_numbers = #tpu.dot_dimension_numbers<[1], [0], [0], [1], [0, 0, 1, 1], [], []>} : vector<16x128xf32>, vector<128x128xf32>, vector<16x128xf32> -> vector<16x128xf32>
    %43 = arith.addf %37, %42 : vector<16x128xf32>
    %c3_45 = arith.constant 3 : index
    %c0_46 = arith.constant 0 : index
    %c0_47 = arith.constant 0 : index
    %44 = vector.load %arg7[%c3_45, %c0_46, %c0_47] : memref<4x16x128xf32, #tpu.memory_space<vmem>>, vector<1x16x128xf32>
    %45 = vector.shape_cast %44 : vector<1x16x128xf32> to vector<16x128xf32>
    %46 = vector.shape_cast %43 : vector<16x128xf32> to vector<1x16x128xf32>
    tpu.vector_store %arg7[%c3_45, %c0_46, %c0_47], %46 {strides = array<i32>} : memref<4x16x128xf32, #tpu.memory_space<vmem>>, vector<1x16x128xf32>,
    %c0_i32_48 = arith.constant 0 : i32
    %47 = arith.cmpi eq, %arg2, %c0_i32_48 : i32
    %48 = arith.extui %47 : i1 to i32
    %c0_i32_49 = arith.constant 0 : i32
    %49 = arith.cmpi ne, %48, %c0_i32_49 : i32
    scf.if %49 {
      %c0_50 = arith.constant 0 : index
      %c0_51 = arith.constant 0 : index
      %c0_52 = arith.constant 0 : index
      %50 = vector.load %arg7[%c0_50, %c0_51, %c0_52] : memref<4x16x128xf32, #tpu.memory_space<vmem>>, vector<1x16x128xf32>
      %51 = vector.shape_cast %50 : vector<1x16x128xf32> to vector<16x128xf32>
      %c0_53 = arith.constant 0 : index
      %c0_54 = arith.constant 0 : index
      %52 = memref.load %arg3[%c0_53, %c0_54] : memref<4x4xf32, #tpu.memory_space<smem>>
      %53 = vector.broadcast %52 : f32 to vector<16x128xf32>
      %54 = arith.mulf %51, %53 : vector<16x128xf32>
      %c1_55 = arith.constant 1 : index
      %c0_56 = arith.constant 0 : index
      %c0_57 = arith.constant 0 : index
      %55 = vector.load %arg7[%c1_55, %c0_56, %c0_57] : memref<4x16x128xf32, #tpu.memory_space<vmem>>, vector<1x16x128xf32>
      %56 = vector.shape_cast %55 : vector<1x16x128xf32> to vector<16x128xf32>
      %c0_58 = arith.constant 0 : index
      %c1_59 = arith.constant 1 : index
      %57 = memref.load %arg3[%c0_58, %c1_59] : memref<4x4xf32, #tpu.memory_space<smem>>
      %58 = vector.broadcast %57 : f32 to vector<16x128xf32>
      %59 = arith.mulf %56, %58 : vector<16x128xf32>
      %60 = arith.addf %54, %59 : vector<16x128xf32>
      %c2_60 = arith.constant 2 : index
      %c0_61 = arith.constant 0 : index
      %c0_62 = arith.constant 0 : index
      %61 = vector.load %arg7[%c2_60, %c0_61, %c0_62] : memref<4x16x128xf32, #tpu.memory_space<vmem>>, vector<1x16x128xf32>
      %62 = vector.shape_cast %61 : vector<1x16x128xf32> to vector<16x128xf32>
      %c0_63 = arith.constant 0 : index
      %c2_64 = arith.constant 2 : index
      %63 = memref.load %arg3[%c0_63, %c2_64] : memref<4x4xf32, #tpu.memory_space<smem>>
      %64 = vector.broadcast %63 : f32 to vector<16x128xf32>
      %65 = arith.mulf %62, %64 : vector<16x128xf32>
      %66 = arith.addf %60, %65 : vector<16x128xf32>
      %c3_65 = arith.constant 3 : index
      %c0_66 = arith.constant 0 : index
      %c0_67 = arith.constant 0 : index
      %67 = vector.load %arg7[%c3_65, %c0_66, %c0_67] : memref<4x16x128xf32, #tpu.memory_space<vmem>>, vector<1x16x128xf32>
      %68 = vector.shape_cast %67 : vector<1x16x128xf32> to vector<16x128xf32>
      %c0_68 = arith.constant 0 : index
      %c3_69 = arith.constant 3 : index
      %69 = memref.load %arg3[%c0_68, %c3_69] : memref<4x4xf32, #tpu.memory_space<smem>>
      %70 = vector.broadcast %69 : f32 to vector<16x128xf32>
      %71 = arith.mulf %68, %70 : vector<16x128xf32>
      %72 = arith.addf %66, %71 : vector<16x128xf32>
      %c0_70 = arith.constant 0 : index
      %c0_71 = arith.constant 0 : index
      %c0_72 = arith.constant 0 : index
      %73 = vector.load %arg6[%c0_70, %c0_71, %c0_72] : memref<4x16x128xf32, #tpu.memory_space<vmem>>, vector<1x16x128xf32>
      %74 = vector.shape_cast %73 : vector<1x16x128xf32> to vector<16x128xf32>
      %75 = vector.shape_cast %72 : vector<16x128xf32> to vector<1x16x128xf32>
      tpu.vector_store %arg6[%c0_70, %c0_71, %c0_72], %75 {strides = array<i32>} : memref<4x16x128xf32, #tpu.memory_space<vmem>>, vector<1x16x128xf32>,
      %c0_73 = arith.constant 0 : index
      %c0_74 = arith.constant 0 : index
      %c0_75 = arith.constant 0 : index
      %76 = vector.load %arg7[%c0_73, %c0_74, %c0_75] : memref<4x16x128xf32, #tpu.memory_space<vmem>>, vector<1x16x128xf32>
      %77 = vector.shape_cast %76 : vector<1x16x128xf32> to vector<16x128xf32>
      %c1_76 = arith.constant 1 : index
      %c0_77 = arith.constant 0 : index
      %78 = memref.load %arg3[%c1_76, %c0_77] : memref<4x4xf32, #tpu.memory_space<smem>>
      %79 = vector.broadcast %78 : f32 to vector<16x128xf32>
      %80 = arith.mulf %77, %79 : vector<16x128xf32>
      %c1_78 = arith.constant 1 : index
      %c0_79 = arith.constant 0 : index
      %c0_80 = arith.constant 0 : index
      %81 = vector.load %arg7[%c1_78, %c0_79, %c0_80] : memref<4x16x128xf32, #tpu.memory_space<vmem>>, vector<1x16x128xf32>
      %82 = vector.shape_cast %81 : vector<1x16x128xf32> to vector<16x128xf32>
      %c1_81 = arith.constant 1 : index
      %c1_82 = arith.constant 1 : index
      %83 = memref.load %arg3[%c1_81, %c1_82] : memref<4x4xf32, #tpu.memory_space<smem>>
      %84 = vector.broadcast %83 : f32 to vector<16x128xf32>
      %85 = arith.mulf %82, %84 : vector<16x128xf32>
      %86 = arith.addf %80, %85 : vector<16x128xf32>
      %c2_83 = arith.constant 2 : index
      %c0_84 = arith.constant 0 : index
      %c0_85 = arith.constant 0 : index
      %87 = vector.load %arg7[%c2_83, %c0_84, %c0_85] : memref<4x16x128xf32, #tpu.memory_space<vmem>>, vector<1x16x128xf32>
      %88 = vector.shape_cast %87 : vector<1x16x128xf32> to vector<16x128xf32>
      %c1_86 = arith.constant 1 : index
      %c2_87 = arith.constant 2 : index
      %89 = memref.load %arg3[%c1_86, %c2_87] : memref<4x4xf32, #tpu.memory_space<smem>>
      %90 = vector.broadcast %89 : f32 to vector<16x128xf32>
      %91 = arith.mulf %88, %90 : vector<16x128xf32>
      %92 = arith.addf %86, %91 : vector<16x128xf32>
      %c3_88 = arith.constant 3 : index
      %c0_89 = arith.constant 0 : index
      %c0_90 = arith.constant 0 : index
      %93 = vector.load %arg7[%c3_88, %c0_89, %c0_90] : memref<4x16x128xf32, #tpu.memory_space<vmem>>, vector<1x16x128xf32>
      %94 = vector.shape_cast %93 : vector<1x16x128xf32> to vector<16x128xf32>
      %c1_91 = arith.constant 1 : index
      %c3_92 = arith.constant 3 : index
      %95 = memref.load %arg3[%c1_91, %c3_92] : memref<4x4xf32, #tpu.memory_space<smem>>
      %96 = vector.broadcast %95 : f32 to vector<16x128xf32>
      %97 = arith.mulf %94, %96 : vector<16x128xf32>
      %98 = arith.addf %92, %97 : vector<16x128xf32>
      %c1_93 = arith.constant 1 : index
      %c0_94 = arith.constant 0 : index
      %c0_95 = arith.constant 0 : index
      %99 = vector.load %arg6[%c1_93, %c0_94, %c0_95] : memref<4x16x128xf32, #tpu.memory_space<vmem>>, vector<1x16x128xf32>
      %100 = vector.shape_cast %99 : vector<1x16x128xf32> to vector<16x128xf32>
      %101 = vector.shape_cast %98 : vector<16x128xf32> to vector<1x16x128xf32>
      tpu.vector_store %arg6[%c1_93, %c0_94, %c0_95], %101 {strides = array<i32>} : memref<4x16x128xf32, #tpu.memory_space<vmem>>, vector<1x16x128xf32>,
      %c0_96 = arith.constant 0 : index
      %c0_97 = arith.constant 0 : index
      %c0_98 = arith.constant 0 : index
      %102 = vector.load %arg7[%c0_96, %c0_97, %c0_98] : memref<4x16x128xf32, #tpu.memory_space<vmem>>, vector<1x16x128xf32>
      %103 = vector.shape_cast %102 : vector<1x16x128xf32> to vector<16x128xf32>
      %c2_99 = arith.constant 2 : index
      %c0_100 = arith.constant 0 : index
      %104 = memref.load %arg3[%c2_99, %c0_100] : memref<4x4xf32, #tpu.memory_space<smem>>
      %105 = vector.broadcast %104 : f32 to vector<16x128xf32>
      %106 = arith.mulf %103, %105 : vector<16x128xf32>
      %c1_101 = arith.constant 1 : index
      %c0_102 = arith.constant 0 : index
      %c0_103 = arith.constant 0 : index
      %107 = vector.load %arg7[%c1_101, %c0_102, %c0_103] : memref<4x16x128xf32, #tpu.memory_space<vmem>>, vector<1x16x128xf32>
      %108 = vector.shape_cast %107 : vector<1x16x128xf32> to vector<16x128xf32>
      %c2_104 = arith.constant 2 : index
      %c1_105 = arith.constant 1 : index
      %109 = memref.load %arg3[%c2_104, %c1_105] : memref<4x4xf32, #tpu.memory_space<smem>>
      %110 = vector.broadcast %109 : f32 to vector<16x128xf32>
      %111 = arith.mulf %108, %110 : vector<16x128xf32>
      %112 = arith.addf %106, %111 : vector<16x128xf32>
      %c2_106 = arith.constant 2 : index
      %c0_107 = arith.constant 0 : index
      %c0_108 = arith.constant 0 : index
      %113 = vector.load %arg7[%c2_106, %c0_107, %c0_108] : memref<4x16x128xf32, #tpu.memory_space<vmem>>, vector<1x16x128xf32>
      %114 = vector.shape_cast %113 : vector<1x16x128xf32> to vector<16x128xf32>
      %c2_109 = arith.constant 2 : index
      %c2_110 = arith.constant 2 : index
      %115 = memref.load %arg3[%c2_109, %c2_110] : memref<4x4xf32, #tpu.memory_space<smem>>
      %116 = vector.broadcast %115 : f32 to vector<16x128xf32>
      %117 = arith.mulf %114, %116 : vector<16x128xf32>
      %118 = arith.addf %112, %117 : vector<16x128xf32>
      %c3_111 = arith.constant 3 : index
      %c0_112 = arith.constant 0 : index
      %c0_113 = arith.constant 0 : index
      %119 = vector.load %arg7[%c3_111, %c0_112, %c0_113] : memref<4x16x128xf32, #tpu.memory_space<vmem>>, vector<1x16x128xf32>
      %120 = vector.shape_cast %119 : vector<1x16x128xf32> to vector<16x128xf32>
      %c2_114 = arith.constant 2 : index
      %c3_115 = arith.constant 3 : index
      %121 = memref.load %arg3[%c2_114, %c3_115] : memref<4x4xf32, #tpu.memory_space<smem>>
      %122 = vector.broadcast %121 : f32 to vector<16x128xf32>
      %123 = arith.mulf %120, %122 : vector<16x128xf32>
      %124 = arith.addf %118, %123 : vector<16x128xf32>
      %c2_116 = arith.constant 2 : index
      %c0_117 = arith.constant 0 : index
      %c0_118 = arith.constant 0 : index
      %125 = vector.load %arg6[%c2_116, %c0_117, %c0_118] : memref<4x16x128xf32, #tpu.memory_space<vmem>>, vector<1x16x128xf32>
      %126 = vector.shape_cast %125 : vector<1x16x128xf32> to vector<16x128xf32>
      %127 = vector.shape_cast %124 : vector<16x128xf32> to vector<1x16x128xf32>
      tpu.vector_store %arg6[%c2_116, %c0_117, %c0_118], %127 {strides = array<i32>} : memref<4x16x128xf32, #tpu.memory_space<vmem>>, vector<1x16x128xf32>,
      %c0_119 = arith.constant 0 : index
      %c0_120 = arith.constant 0 : index
      %c0_121 = arith.constant 0 : index
      %128 = vector.load %arg7[%c0_119, %c0_120, %c0_121] : memref<4x16x128xf32, #tpu.memory_space<vmem>>, vector<1x16x128xf32>
      %129 = vector.shape_cast %128 : vector<1x16x128xf32> to vector<16x128xf32>
      %c3_122 = arith.constant 3 : index
      %c0_123 = arith.constant 0 : index
      %130 = memref.load %arg3[%c3_122, %c0_123] : memref<4x4xf32, #tpu.memory_space<smem>>
      %131 = vector.broadcast %130 : f32 to vector<16x128xf32>
      %132 = arith.mulf %129, %131 : vector<16x128xf32>
      %c1_124 = arith.constant 1 : index
      %c0_125 = arith.constant 0 : index
      %c0_126 = arith.constant 0 : index
      %133 = vector.load %arg7[%c1_124, %c0_125, %c0_126] : memref<4x16x128xf32, #tpu.memory_space<vmem>>, vector<1x16x128xf32>
      %134 = vector.shape_cast %133 : vector<1x16x128xf32> to vector<16x128xf32>
      %c3_127 = arith.constant 3 : index
      %c1_128 = arith.constant 1 : index
      %135 = memref.load %arg3[%c3_127, %c1_128] : memref<4x4xf32, #tpu.memory_space<smem>>
      %136 = vector.broadcast %135 : f32 to vector<16x128xf32>
      %137 = arith.mulf %134, %136 : vector<16x128xf32>
      %138 = arith.addf %132, %137 : vector<16x128xf32>
      %c2_129 = arith.constant 2 : index
      %c0_130 = arith.constant 0 : index
      %c0_131 = arith.constant 0 : index
      %139 = vector.load %arg7[%c2_129, %c0_130, %c0_131] : memref<4x16x128xf32, #tpu.memory_space<vmem>>, vector<1x16x128xf32>
      %140 = vector.shape_cast %139 : vector<1x16x128xf32> to vector<16x128xf32>
      %c3_132 = arith.constant 3 : index
      %c2_133 = arith.constant 2 : index
      %141 = memref.load %arg3[%c3_132, %c2_133] : memref<4x4xf32, #tpu.memory_space<smem>>
      %142 = vector.broadcast %141 : f32 to vector<16x128xf32>
      %143 = arith.mulf %140, %142 : vector<16x128xf32>
      %144 = arith.addf %138, %143 : vector<16x128xf32>
      %c3_134 = arith.constant 3 : index
      %c0_135 = arith.constant 0 : index
      %c0_136 = arith.constant 0 : index
      %145 = vector.load %arg7[%c3_134, %c0_135, %c0_136] : memref<4x16x128xf32, #tpu.memory_space<vmem>>, vector<1x16x128xf32>
      %146 = vector.shape_cast %145 : vector<1x16x128xf32> to vector<16x128xf32>
      %c3_137 = arith.constant 3 : index
      %c3_138 = arith.constant 3 : index
      %147 = memref.load %arg3[%c3_137, %c3_138] : memref<4x4xf32, #tpu.memory_space<smem>>
      %148 = vector.broadcast %147 : f32 to vector<16x128xf32>
      %149 = arith.mulf %146, %148 : vector<16x128xf32>
      %150 = arith.addf %144, %149 : vector<16x128xf32>
      %c3_139 = arith.constant 3 : index
      %c0_140 = arith.constant 0 : index
      %c0_141 = arith.constant 0 : index
      %151 = vector.load %arg6[%c3_139, %c0_140, %c0_141] : memref<4x16x128xf32, #tpu.memory_space<vmem>>, vector<1x16x128xf32>
      %152 = vector.shape_cast %151 : vector<1x16x128xf32> to vector<16x128xf32>
      %153 = vector.shape_cast %150 : vector<16x128xf32> to vector<1x16x128xf32>
      tpu.vector_store %arg6[%c3_139, %c0_140, %c0_141], %153 {strides = array<i32>} : memref<4x16x128xf32, #tpu.memory_space<vmem>>, vector<1x16x128xf32>,
    } else {
    }
    return
  }
  func.func @transform_0(%arg0: i32, %arg1: i32, %arg2: i32) -> (i32, i32) {
    %c0_i32 = arith.constant 0 : i32
    %c0_i32_0 = arith.constant 0 : i32
    %c0_i32_1 = arith.constant 0 : i32
    return %c0_i32, %c0_i32_0 : i32, i32
  }
  func.func @transform_1(%arg0: i32, %arg1: i32, %arg2: i32) -> (i32, i32, i32) {
    %c0_i32 = arith.constant 0 : i32
    %c0_i32_0 = arith.constant 0 : i32
    return %c0_i32, %arg0, %arg2 : i32, i32, i32
  }
  func.func @transform_2(%arg0: i32, %arg1: i32, %arg2: i32) -> (i32, i32, i32) {
    %c0_i32 = arith.constant 0 : i32
    %c0_i32_0 = arith.constant 0 : i32
    return %c0_i32, %arg2, %arg1 : i32, i32, i32
  }
  func.func @transform_3(%arg0: i32, %arg1: i32, %arg2: i32) -> (i32, i32, i32) {
    %c0_i32 = arith.constant 0 : i32
    %c0_i32_0 = arith.constant 0 : i32
    return %c0_i32, %arg0, %arg1 : i32, i32, i32
  }
}

</mosaic_0001>

<llo_original>
// kernel: tpu_custom_call.1
$region0: #{tpu_custom_call.1}
  #allocation0 [shape = 'u32[]', space=smem, size = 0x4, offset = 0x4, fixed_abs, tag = 'smem constant byte address 0x4 - core index']
  #allocation1 [shape = 'u32[144,128]{1,0:T(1,128)}', space=vmem, size = 0x12000, scoped, tag = 'internal scratch']
  #allocation2 [shape = 'f32[4,16,128]{2,1,0:T(8,128)}', space=vmem, size = 0x8000, scoped, tag = 'scratch operand']
  %s0 = inlined_call_operand.hbm [shape: f32[4,4], index: 0, kind: input, shape index: {}]
  %s1 = inlined_call_operand.hbm [shape: f32[4,16,128], index: 1, kind: input, shape index: {}]
  %s2 = inlined_call_operand.hbm [shape: f32[4,128,128], index: 2, kind: input, shape index: {}]
  %s3 = inlined_call_operand.hbm [shape: f32[4,16,128], index: 3, kind: output, shape index: {}]
  %s4 = sld [smem:[#allocation0]]
  $region42: #{tpu_custom_call.1} parent=0
    _
  %s6 = ssub.s32 1, %s4
  %s7 = scalar_select 0, %s6, %s4
  $region1: #{tpu_custom_call.1} parent=0
    #allocation3 [shape = 'u8[2048]{0}', space=smem, size = 0x800, scoped, tag = 'input window, operand 0, single buffered']
    #allocation4 [shape = 's32[1]{0}', space=sflag, size = 0x4, scoped, tag = 'scoped memory for tpu_custom_call.1']
    #allocation5 [shape = 's32[1]{0}', space=sflag, size = 0x4, scoped, tag = 'scoped memory for tpu_custom_call.1']
    #allocation6 [shape = 's32[1]{0}', space=sflag, size = 0x4, scoped, tag = 'scoped memory for tpu_custom_call.1']
    #allocation7 [shape = 'u8[32768]{0}', space=vmem, size = 0x8000, scoped, tag = 'input window, operand 1, single buffered']
    #allocation8 [shape = 'u8[262144]{0}', space=vmem, size = 0x40000, scoped, tag = 'input window, operand 2, single buffered']
    #allocation9 [shape = 's32[1]{0}', space=sflag, size = 0x4, scoped, tag = 'scoped memory for tpu_custom_call.1']
    #allocation10 [shape = 'u8[32768]{0}', space=vmem, size = 0x8000, scoped, tag = 'output window, operand 0, single buffered']
    %8 = vsyncpa [#allocation6], 0
    %9 = vsyncpa [#allocation4], 0
    %10 = vsyncpa [#allocation9], 0
    %11 = vsyncpa [#allocation5], 0
    // Predicated region
    $region2: #{tpu_custom_call.1} parent=1 // pred_check
      _
    $region3: #{tpu_custom_call.1} parent=1 // pred_check_branch
      %13 = sbr.rel (0) target = $region5
    $region4: #{tpu_custom_call.1} parent=1 // pred_region
      %s15 = ssub.s32 64, 64
      %16 = vsyncadd [#allocation6], %s15
      %19 = dma.hbm_to_smem %s0, 64, [#allocation3], [#allocation6]
    $region5: #{tpu_custom_call.1} parent=1 // pred_fallthru
      _
    // Predicated region
    $region6: #{tpu_custom_call.1} parent=1 // pred_check
      _
    $region7: #{tpu_custom_call.1} parent=1 // pred_check_branch
      %21 = sbr.rel (0) target = $region9
    $region8: #{tpu_custom_call.1} parent=1 // pred_region
      %s23 = ssub.s32 1024, 1024
      %24 = vsyncadd [#allocation4], %s23
      %s25 = sshll.u32 [#allocation7], 4
      %s26 = int_to_ptr.vmem [resolvable:$true] %s25
      %31 = dma.hbm_to_vmem [thread:$0]  %s1, 1024, %s26, [#allocation4], 128, 128, 8
    $region9: #{tpu_custom_call.1} parent=1 // pred_fallthru
      _
    // Predicated region
    $region10: #{tpu_custom_call.1} parent=1 // pred_check
      _
    $region11: #{tpu_custom_call.1} parent=1 // pred_check_branch
      %33 = sbr.rel (0) target = $region13
    $region12: #{tpu_custom_call.1} parent=1 // pred_region
      %s35 = ssub.s32 8192, 8192
      %36 = vsyncadd [#allocation9], %s35
      %s37 = sshll.u32 [#allocation8], 4
      %s38 = int_to_ptr.vmem [resolvable:$true] %s37
      %43 = dma.hbm_to_vmem [thread:$0]  %s2, 8192, %s38, [#allocation9], 128, 128, 8
    $region13: #{tpu_custom_call.1} parent=1 // pred_fallthru
      _
    // Predicated region
    $region14: #{tpu_custom_call.1} parent=1 // pred_check
      _
    $region15: #{tpu_custom_call.1} parent=1 // pred_check_branch
      %45 = sbr.rel (0) target = $region17
    $region16: #{tpu_custom_call.1} parent=1 // pred_region
      %46 = dma.done [#allocation6], 64
    $region17: #{tpu_custom_call.1} parent=1 // pred_fallthru
      _
    // Predicated region
    $region18: #{tpu_custom_call.1} parent=1 // pred_check
      _
    $region19: #{tpu_custom_call.1} parent=1 // pred_check_branch
      %48 = sbr.rel (0) target = $region21
    $region20: #{tpu_custom_call.1} parent=1 // pred_region
      %49 = dma.done [#allocation4], 1024
    $region21: #{tpu_custom_call.1} parent=1 // pred_fallthru
      _
    // Predicated region
    $region22: #{tpu_custom_call.1} parent=1 // pred_check
      _
    $region23: #{tpu_custom_call.1} parent=1 // pred_check_branch
      %51 = sbr.rel (0) target = $region25
    $region24: #{tpu_custom_call.1} parent=1 // pred_region
      %52 = dma.done [#allocation9], 8192
    $region25: #{tpu_custom_call.1} parent=1 // pred_fallthru
      _
    %53 = sfence
    %p54 = scmp.eq.s32.totalorder 0, 0
    // Predicated region
    $region26: #{tpu_custom_call.1} parent=1 // pred_check
      %p55 = pneg %p54
    $region27: #{tpu_custom_call.1} parent=1 // pred_check_branch
      %57 = sbr.rel (%p55) target = $region29
    $region28: #{tpu_custom_call.1} parent=1 // pred_region
      %58 = vst [vmem:[#allocation2] sm:$0xff] 0.0
      %59 = vst [vmem:[#allocation2 + $0x8] sm:$0xff] 0.0
      %60 = vst [vmem:[#allocation2 + $0x10] sm:$0xff] 0.0
      %61 = vst [vmem:[#allocation2 + $0x18] sm:$0xff] 0.0
      %62 = vst [vmem:[#allocation2 + $0x20] sm:$0xff] 0.0
      %63 = vst [vmem:[#allocation2 + $0x28] sm:$0xff] 0.0
      %64 = vst [vmem:[#allocation2 + $0x30] sm:$0xff] 0.0
      %65 = vst [vmem:[#allocation2 + $0x38] sm:$0xff] 0.0
    $region29: #{tpu_custom_call.1} parent=1 // pred_fallthru
      _
    %v66 = vld [vmem:[#allocation2] sm:$0xff]
    %v67 = vld [vmem:[#allocation2 + $0x8] sm:$0xff]
    %v68 = vld [vmem:[#allocation7] sm:$0xff]
    %v69 = vld [vmem:[#allocation7 + $0x8] sm:$0xff]
    %v70 = vld [vmem:[#allocation8] sm:$0xff]
    %v71 = vld [vmem:[#allocation8 + $0x8] sm:$0xff]
    %v72 = vld [vmem:[#allocation8 + $0x10] sm:$0xff]
    %v73 = vld [vmem:[#allocation8 + $0x18] sm:$0xff]
    %v74 = vld [vmem:[#allocation8 + $0x20] sm:$0xff]
    %v75 = vld [vmem:[#allocation8 + $0x28] sm:$0xff]
    %v76 = vld [vmem:[#allocation8 + $0x30] sm:$0xff]
    %v77 = vld [vmem:[#allocation8 + $0x38] sm:$0xff]
    %v78 = vld [vmem:[#allocation8 + $0x40] sm:$0xff]
    %v79 = vld [vmem:[#allocation8 + $0x48] sm:$0xff]
    %v80 = vld [vmem:[#allocation8 + $0x50] sm:$0xff]
    %v81 = vld [vmem:[#allocation8 + $0x58] sm:$0xff]
    %v82 = vld [vmem:[#allocation8 + $0x60] sm:$0xff]
    %v83 = vld [vmem:[#allocation8 + $0x68] sm:$0xff]
    %v84 = vld [vmem:[#allocation8 + $0x70] sm:$0xff]
    %v85 = vld [vmem:[#allocation8 + $0x78] sm:$0xff]
    %86 = vmatprep.subr.mxu0 0.0
    %87 = vmatpush1.msra.mxu0 %v70
    %88 = vmatprep.subr.mxu0 0.0
    %89 = vmatpush1.msra.mxu0 %v71
    %90 = vmatprep.subr.mxu0 0.0
    %91 = vmatpush1.msra.mxu0 %v72
    %92 = vmatprep.subr.mxu0 0.0
    %93 = vmatpush1.msra.mxu0 %v73
    %94 = vmatprep.subr.mxu0 0.0
    %95 = vmatpush1.msra.mxu0 %v74
    %96 = vmatprep.subr.mxu0 0.0
    %97 = vmatpush1.msra.mxu0 %v75
    %98 = vmatprep.subr.mxu0 0.0
    %99 = vmatpush1.msra.mxu0 %v76
    %100 = vmatprep.subr.mxu0 0.0
    %101 = vmatpush1.msra.mxu0 %v77
    %102 = vmatprep.subr.mxu0 0.0
    %103 = vmatpush1.msra.mxu0 %v78
    %104 = vmatprep.subr.mxu0 0.0
    %105 = vmatpush1.msra.mxu0 %v79
    %106 = vmatprep.subr.mxu0 0.0
    %107 = vmatpush1.msra.mxu0 %v80
    %108 = vmatprep.subr.mxu0 0.0
    %109 = vmatpush1.msra.mxu0 %v81
    %110 = vmatprep.subr.mxu0 0.0
    %111 = vmatpush1.msra.mxu0 %v82
    %112 = vmatprep.subr.mxu0 0.0
    %113 = vmatpush1.msra.mxu0 %v83
    %114 = vmatprep.subr.mxu0 0.0
    %115 = vmatpush1.msra.mxu0 %v84
    %116 = vmatprep.subr.mxu0 0.0
    %117 = vmatpush1.msra.mxu0 %v85
    %118 = vmatprep.subr.mxu0 0.0
    %119 = vmatpush1.msra.mxu0 0.0
    %120 = vmatprep.subr.mxu0 0.0
    %121 = vmatpush1.msra.mxu0 0.0
    %122 = vmatprep.subr.mxu0 0.0
    %123 = vmatpush1.msra.mxu0 0.0
    %124 = vmatprep.subr.mxu0 0.0
    %125 = vmatpush1.msra.mxu0 0.0
    %126 = vmatprep.subr.mxu0 0.0
    %127 = vmatpush1.msra.mxu0 0.0
    %128 = vmatprep.subr.mxu0 0.0
    %129 = vmatpush1.msra.mxu0 0.0
    %130 = vmatprep.subr.mxu0 0.0
    %131 = vmatpush1.msra.mxu0 0.0
    %132 = vmatprep.subr.mxu0 0.0
    %133 = vmatpush1.msra.mxu0 0.0
    %134 = vmatprep.subr.mxu0 0.0
    %135 = vmatpush1.msra.mxu0 0.0
    %136 = vmatprep.subr.mxu0 0.0
    %137 = vmatpush1.msra.mxu0 0.0
    %138 = vmatprep.subr.mxu0 0.0
    %139 = vmatpush1.msra.mxu0 0.0
    %140 = vmatprep.subr.mxu0 0.0
    %141 = vmatpush1.msra.mxu0 0.0
    %142 = vmatprep.subr.mxu0 0.0
    %143 = vmatpush1.msra.mxu0 0.0
    %144 = vmatprep.subr.mxu0 0.0
    %145 = vmatpush1.msra.mxu0 0.0
    %146 = vmatprep.subr.mxu0 0.0
    %147 = vmatpush1.msra.mxu0 0.0
    %148 = vmatprep.subr.mxu0 0.0
    %149 = vmatpush1.msra.mxu0 0.0
    %150 = vmatprep.mubr.f32.mxu0 0.0
    %151 = vmatmul.mubr.f32.gmra.mrb[0].mxu0 %v68
    %v152 = vpop.f32.mrb[0].mxu0
    %v153 = vadd.f32 0.0, %v152
    %v154 = vpop.f32.mrb[0].mxu0
    %155 = vmatprep.mubr.f32.mxu0 0.0
    %156 = vmatmul.mubr.f32.gmra.mrb[0].mxu0 %v69
    %v157 = vpop.f32.mrb[0].mxu0
    %v158 = vadd.f32 0.0, %v157
    %v159 = vpop.f32.mrb[0].mxu0
    %160 = vdwg.mxu0
    %v161 = vadd.f32 %v66, %v153
    %v162 = vadd.f32 %v67, %v158
    %163 = vst [vmem:[#allocation2] sm:$0xff] %v161
    %164 = vst [vmem:[#allocation2 + $0x8] sm:$0xff] %v162
    %s165 = scalar_lea.vmem [#allocation2], 16
    %v166 = vld [vmem:[%s165] sm:$0xff]
    %v167 = vld [vmem:[%s165 + $0x8] sm:$0xff]
    %s168 = scalar_lea.vmem [#allocation7], 16
    %v169 = vld [vmem:[%s168] sm:$0xff]
    %v170 = vld [vmem:[%s168 + $0x8] sm:$0xff]
    %s171 = scalar_lea.vmem [#allocation8], 128
    %v172 = vld [vmem:[%s171] sm:$0xff]
    %v173 = vld [vmem:[%s171 + $0x8] sm:$0xff]
    %v174 = vld [vmem:[%s171 + $0x10] sm:$0xff]
    %v175 = vld [vmem:[%s171 + $0x18] sm:$0xff]
    %v176 = vld [vmem:[%s171 + $0x20] sm:$0xff]
    %v177 = vld [vmem:[%s171 + $0x28] sm:$0xff]
    %v178 = vld [vmem:[%s171 + $0x30] sm:$0xff]
    %v179 = vld [vmem:[%s171 + $0x38] sm:$0xff]
    %v180 = vld [vmem:[%s171 + $0x40] sm:$0xff]
    %v181 = vld [vmem:[%s171 + $0x48] sm:$0xff]
    %v182 = vld [vmem:[%s171 + $0x50] sm:$0xff]
    %v183 = vld [vmem:[%s171 + $0x58] sm:$0xff]
    %v184 = vld [vmem:[%s171 + $0x60] sm:$0xff]
    %v185 = vld [vmem:[%s171 + $0x68] sm:$0xff]
    %v186 = vld [vmem:[%s171 + $0x70] sm:$0xff]
    %v187 = vld [vmem:[%s171 + $0x78] sm:$0xff]
    %188 = vmatprep.subr.mxu0 0.0
    %189 = vmatpush1.msra.mxu0 %v172
    %190 = vmatprep.subr.mxu0 0.0
    %191 = vmatpush1.msra.mxu0 %v173
    %192 = vmatprep.subr.mxu0 0.0
    %193 = vmatpush1.msra.mxu0 %v174
    %194 = vmatprep.subr.mxu0 0.0
    %195 = vmatpush1.msra.mxu0 %v175
    %196 = vmatprep.subr.mxu0 0.0
    %197 = vmatpush1.msra.mxu0 %v176
    %198 = vmatprep.subr.mxu0 0.0
    %199 = vmatpush1.msra.mxu0 %v177
    %200 = vmatprep.subr.mxu0 0.0
    %201 = vmatpush1.msra.mxu0 %v178
    %202 = vmatprep.subr.mxu0 0.0
    %203 = vmatpush1.msra.mxu0 %v179
    %204 = vmatprep.subr.mxu0 0.0
    %205 = vmatpush1.msra.mxu0 %v180
    %206 = vmatprep.subr.mxu0 0.0
    %207 = vmatpush1.msra.mxu0 %v181
    %208 = vmatprep.subr.mxu0 0.0
    %209 = vmatpush1.msra.mxu0 %v182
    %210 = vmatprep.subr.mxu0 0.0
    %211 = vmatpush1.msra.mxu0 %v183
    %212 = vmatprep.subr.mxu0 0.0
    %213 = vmatpush1.msra.mxu0 %v184
    %214 = vmatprep.subr.mxu0 0.0
    %215 = vmatpush1.msra.mxu0 %v185
    %216 = vmatprep.subr.mxu0 0.0
    %217 = vmatpush1.msra.mxu0 %v186
    %218 = vmatprep.subr.mxu0 0.0
    %219 = vmatpush1.msra.mxu0 %v187
    %220 = vmatprep.subr.mxu0 0.0
    %221 = vmatpush1.msra.mxu0 0.0
    %222 = vmatprep.subr.mxu0 0.0
    %223 = vmatpush1.msra.mxu0 0.0
    %224 = vmatprep.subr.mxu0 0.0
    %225 = vmatpush1.msra.mxu0 0.0
    %226 = vmatprep.subr.mxu0 0.0
    %227 = vmatpush1.msra.mxu0 0.0
    %228 = vmatprep.subr.mxu0 0.0
    %229 = vmatpush1.msra.mxu0 0.0
    %230 = vmatprep.subr.mxu0 0.0
    %231 = vmatpush1.msra.mxu0 0.0
    %232 = vmatprep.subr.mxu0 0.0
    %233 = vmatpush1.msra.mxu0 0.0
    %234 = vmatprep.subr.mxu0 0.0
    %235 = vmatpush1.msra.mxu0 0.0
    %236 = vmatprep.subr.mxu0 0.0
    %237 = vmatpush1.msra.mxu0 0.0
    %238 = vmatprep.subr.mxu0 0.0
    %239 = vmatpush1.msra.mxu0 0.0
    %240 = vmatprep.subr.mxu0 0.0
    %241 = vmatpush1.msra.mxu0 0.0
    %242 = vmatprep.subr.mxu0 0.0
    %243 = vmatpush1.msra.mxu0 0.0
    %244 = vmatprep.subr.mxu0 0.0
    %245 = vmatpush1.msra.mxu0 0.0
    %246 = vmatprep.subr.mxu0 0.0
    %247 = vmatpush1.msra.mxu0 0.0
    %248 = vmatprep.subr.mxu0 0.0
    %249 = vmatpush1.msra.mxu0 0.0
    %250 = vmatprep.subr.mxu0 0.0
    %251 = vmatpush1.msra.mxu0 0.0
    %252 = vmatprep.mubr.f32.mxu0 0.0
    %253 = vmatmul.mubr.f32.gmra.mrb[0].mxu0 %v169
    %v254 = vpop.f32.mrb[0].mxu0
    %v255 = vadd.f32 0.0, %v254
    %v256 = vpop.f32.mrb[0].mxu0
    %257 = vmatprep.mubr.f32.mxu0 0.0
    %258 = vmatmul.mubr.f32.gmra.mrb[0].mxu0 %v170
    %v259 = vpop.f32.mrb[0].mxu0
    %v260 = vadd.f32 0.0, %v259
    %v261 = vpop.f32.mrb[0].mxu0
    %262 = vdwg.mxu0
    %v263 = vadd.f32 %v166, %v255
    %v264 = vadd.f32 %v167, %v260
    %265 = vst [vmem:[%s165] sm:$0xff] %v263
    %266 = vst [vmem:[%s165 + $0x8] sm:$0xff] %v264
    %s267 = scalar_lea.vmem [#allocation2], 32
    %v268 = vld [vmem:[%s267] sm:$0xff]
    %v269 = vld [vmem:[%s267 + $0x8] sm:$0xff]
    %s270 = scalar_lea.vmem [#allocation7], 32
    %v271 = vld [vmem:[%s270] sm:$0xff]
    %v272 = vld [vmem:[%s270 + $0x8] sm:$0xff]
    %s273 = scalar_lea.vmem [#allocation8], 256
    %v274 = vld [vmem:[%s273] sm:$0xff]
    %v275 = vld [vmem:[%s273 + $0x8] sm:$0xff]
    %v276 = vld [vmem:[%s273 + $0x10] sm:$0xff]
    %v277 = vld [vmem:[%s273 + $0x18] sm:$0xff]
    %v278 = vld [vmem:[%s273 + $0x20] sm:$0xff]
    %v279 = vld [vmem:[%s273 + $0x28] sm:$0xff]
    %v280 = vld [vmem:[%s273 + $0x30] sm:$0xff]
    %v281 = vld [vmem:[%s273 + $0x38] sm:$0xff]
    %v282 = vld [vmem:[%s273 + $0x40] sm:$0xff]
    %v283 = vld [vmem:[%s273 + $0x48] sm:$0xff]
    %v284 = vld [vmem:[%s273 + $0x50] sm:$0xff]
    %v285 = vld [vmem:[%s273 + $0x58] sm:$0xff]
    %v286 = vld [vmem:[%s273 + $0x60] sm:$0xff]
    %v287 = vld [vmem:[%s273 + $0x68] sm:$0xff]
    %v288 = vld [vmem:[%s273 + $0x70] sm:$0xff]
    %v289 = vld [vmem:[%s273 + $0x78] sm:$0xff]
    %290 = vmatprep.subr.mxu0 0.0
    %291 = vmatpush1.msra.mxu0 %v274
    %292 = vmatprep.subr.mxu0 0.0
    %293 = vmatpush1.msra.mxu0 %v275
    %294 = vmatprep.subr.mxu0 0.0
    %295 = vmatpush1.msra.mxu0 %v276
    %296 = vmatprep.subr.mxu0 0.0
    %297 = vmatpush1.msra.mxu0 %v277
    %298 = vmatprep.subr.mxu0 0.0
    %299 = vmatpush1.msra.mxu0 %v278
    %300 = vmatprep.subr.mxu0 0.0
    %301 = vmatpush1.msra.mxu0 %v279
    %302 = vmatprep.subr.mxu0 0.0
    %303 = vmatpush1.msra.mxu0 %v280
    %304 = vmatprep.subr.mxu0 0.0
    %305 = vmatpush1.msra.mxu0 %v281
    %306 = vmatprep.subr.mxu0 0.0
    %307 = vmatpush1.msra.mxu0 %v282
    %308 = vmatprep.subr.mxu0 0.0
    %309 = vmatpush1.msra.mxu0 %v283
    %310 = vmatprep.subr.mxu0 0.0
    %311 = vmatpush1.msra.mxu0 %v284
    %312 = vmatprep.subr.mxu0 0.0
    %313 = vmatpush1.msra.mxu0 %v285
    %314 = vmatprep.subr.mxu0 0.0
    %315 = vmatpush1.msra.mxu0 %v286
    %316 = vmatprep.subr.mxu0 0.0
    %317 = vmatpush1.msra.mxu0 %v287
    %318 = vmatprep.subr.mxu0 0.0
    %319 = vmatpush1.msra.mxu0 %v288
    %320 = vmatprep.subr.mxu0 0.0
    %321 = vmatpush1.msra.mxu0 %v289
    %322 = vmatprep.subr.mxu0 0.0
    %323 = vmatpush1.msra.mxu0 0.0
    %324 = vmatprep.subr.mxu0 0.0
    %325 = vmatpush1.msra.mxu0 0.0
    %326 = vmatprep.subr.mxu0 0.0
    %327 = vmatpush1.msra.mxu0 0.0
    %328 = vmatprep.subr.mxu0 0.0
    %329 = vmatpush1.msra.mxu0 0.0
    %330 = vmatprep.subr.mxu0 0.0
    %331 = vmatpush1.msra.mxu0 0.0
    %332 = vmatprep.subr.mxu0 0.0
    %333 = vmatpush1.msra.mxu0 0.0
    %334 = vmatprep.subr.mxu0 0.0
    %335 = vmatpush1.msra.mxu0 0.0
    %336 = vmatprep.subr.mxu0 0.0
    %337 = vmatpush1.msra.mxu0 0.0
    %338 = vmatprep.subr.mxu0 0.0
    %339 = vmatpush1.msra.mxu0 0.0
    %340 = vmatprep.subr.mxu0 0.0
    %341 = vmatpush1.msra.mxu0 0.0
    %342 = vmatprep.subr.mxu0 0.0
    %343 = vmatpush1.msra.mxu0 0.0
    %344 = vmatprep.subr.mxu0 0.0
    %345 = vmatpush1.msra.mxu0 0.0
    %346 = vmatprep.subr.mxu0 0.0
    %347 = vmatpush1.msra.mxu0 0.0
    %348 = vmatprep.subr.mxu0 0.0
    %349 = vmatpush1.msra.mxu0 0.0
    %350 = vmatprep.subr.mxu0 0.0
    %351 = vmatpush1.msra.mxu0 0.0
    %352 = vmatprep.subr.mxu0 0.0
    %353 = vmatpush1.msra.mxu0 0.0
    %354 = vmatprep.mubr.f32.mxu0 0.0
    %355 = vmatmul.mubr.f32.gmra.mrb[0].mxu0 %v271
    %v356 = vpop.f32.mrb[0].mxu0
    %v357 = vadd.f32 0.0, %v356
    %v358 = vpop.f32.mrb[0].mxu0
    %359 = vmatprep.mubr.f32.mxu0 0.0
    %360 = vmatmul.mubr.f32.gmra.mrb[0].mxu0 %v272
    %v361 = vpop.f32.mrb[0].mxu0
    %v362 = vadd.f32 0.0, %v361
    %v363 = vpop.f32.mrb[0].mxu0
    %364 = vdwg.mxu0
    %v365 = vadd.f32 %v268, %v357
    %v366 = vadd.f32 %v269, %v362
    %367 = vst [vmem:[%s267] sm:$0xff] %v365
    %368 = vst [vmem:[%s267 + $0x8] sm:$0xff] %v366
    %s369 = scalar_lea.vmem [#allocation2], 48
    %v370 = vld [vmem:[%s369] sm:$0xff]
    %v371 = vld [vmem:[%s369 + $0x8] sm:$0xff]
    %s372 = scalar_lea.vmem [#allocation7], 48
    %v373 = vld [vmem:[%s372] sm:$0xff]
    %v374 = vld [vmem:[%s372 + $0x8] sm:$0xff]
    %s375 = scalar_lea.vmem [#allocation8], 384
    %v376 = vld [vmem:[%s375] sm:$0xff]
    %v377 = vld [vmem:[%s375 + $0x8] sm:$0xff]
    %v378 = vld [vmem:[%s375 + $0x10] sm:$0xff]
    %v379 = vld [vmem:[%s375 + $0x18] sm:$0xff]
    %v380 = vld [vmem:[%s375 + $0x20] sm:$0xff]
    %v381 = vld [vmem:[%s375 + $0x28] sm:$0xff]
    %v382 = vld [vmem:[%s375 + $0x30] sm:$0xff]
    %v383 = vld [vmem:[%s375 + $0x38] sm:$0xff]
    %v384 = vld [vmem:[%s375 + $0x40] sm:$0xff]
    %v385 = vld [vmem:[%s375 + $0x48] sm:$0xff]
    %v386 = vld [vmem:[%s375 + $0x50] sm:$0xff]
    %v387 = vld [vmem:[%s375 + $0x58] sm:$0xff]
    %v388 = vld [vmem:[%s375 + $0x60] sm:$0xff]
    %v389 = vld [vmem:[%s375 + $0x68] sm:$0xff]
    %v390 = vld [vmem:[%s375 + $0x70] sm:$0xff]
    %v391 = vld [vmem:[%s375 + $0x78] sm:$0xff]
    %392 = vmatprep.subr.mxu0 0.0
    %393 = vmatpush1.msra.mxu0 %v376
    %394 = vmatprep.subr.mxu0 0.0
    %395 = vmatpush1.msra.mxu0 %v377
    %396 = vmatprep.subr.mxu0 0.0
    %397 = vmatpush1.msra.mxu0 %v378
    %398 = vmatprep.subr.mxu0 0.0
    %399 = vmatpush1.msra.mxu0 %v379
    %400 = vmatprep.subr.mxu0 0.0
    %401 = vmatpush1.msra.mxu0 %v380
    %402 = vmatprep.subr.mxu0 0.0
    %403 = vmatpush1.msra.mxu0 %v381
    %404 = vmatprep.subr.mxu0 0.0
    %405 = vmatpush1.msra.mxu0 %v382
    %406 = vmatprep.subr.mxu0 0.0
    %407 = vmatpush1.msra.mxu0 %v383
    %408 = vmatprep.subr.mxu0 0.0
    %409 = vmatpush1.msra.mxu0 %v384
    %410 = vmatprep.subr.mxu0 0.0
    %411 = vmatpush1.msra.mxu0 %v385
    %412 = vmatprep.subr.mxu0 0.0
    %413 = vmatpush1.msra.mxu0 %v386
    %414 = vmatprep.subr.mxu0 0.0
    %415 = vmatpush1.msra.mxu0 %v387
    %416 = vmatprep.subr.mxu0 0.0
    %417 = vmatpush1.msra.mxu0 %v388
    %418 = vmatprep.subr.mxu0 0.0
    %419 = vmatpush1.msra.mxu0 %v389
    %420 = vmatprep.subr.mxu0 0.0
    %421 = vmatpush1.msra.mxu0 %v390
    %422 = vmatprep.subr.mxu0 0.0
    %423 = vmatpush1.msra.mxu0 %v391
    %424 = vmatprep.subr.mxu0 0.0
    %425 = vmatpush1.msra.mxu0 0.0
    %426 = vmatprep.subr.mxu0 0.0
    %427 = vmatpush1.msra.mxu0 0.0
    %428 = vmatprep.subr.mxu0 0.0
    %429 = vmatpush1.msra.mxu0 0.0
    %430 = vmatprep.subr.mxu0 0.0
    %431 = vmatpush1.msra.mxu0 0.0
    %432 = vmatprep.subr.mxu0 0.0
    %433 = vmatpush1.msra.mxu0 0.0
    %434 = vmatprep.subr.mxu0 0.0
    %435 = vmatpush1.msra.mxu0 0.0
    %436 = vmatprep.subr.mxu0 0.0
    %437 = vmatpush1.msra.mxu0 0.0
    %438 = vmatprep.subr.mxu0 0.0
    %439 = vmatpush1.msra.mxu0 0.0
    %440 = vmatprep.subr.mxu0 0.0
    %441 = vmatpush1.msra.mxu0 0.0
    %442 = vmatprep.subr.mxu0 0.0
    %443 = vmatpush1.msra.mxu0 0.0
    %444 = vmatprep.subr.mxu0 0.0
    %445 = vmatpush1.msra.mxu0 0.0
    %446 = vmatprep.subr.mxu0 0.0
    %447 = vmatpush1.msra.mxu0 0.0
    %448 = vmatprep.subr.mxu0 0.0
    %449 = vmatpush1.msra.mxu0 0.0
    %450 = vmatprep.subr.mxu0 0.0
    %451 = vmatpush1.msra.mxu0 0.0
    %452 = vmatprep.subr.mxu0 0.0
    %453 = vmatpush1.msra.mxu0 0.0
    %454 = vmatprep.subr.mxu0 0.0
    %455 = vmatpush1.msra.mxu0 0.0
    %456 = vmatprep.mubr.f32.mxu0 0.0
    %457 = vmatmul.mubr.f32.gmra.mrb[0].mxu0 %v373
    %v458 = vpop.f32.mrb[0].mxu0
    %v459 = vadd.f32 0.0, %v458
    %v460 = vpop.f32.mrb[0].mxu0
    %461 = vmatprep.mubr.f32.mxu0 0.0
    %462 = vmatmul.mubr.f32.gmra.mrb[0].mxu0 %v374
    %v463 = vpop.f32.mrb[0].mxu0
    %v464 = vadd.f32 0.0, %v463
    %v465 = vpop.f32.mrb[0].mxu0
    %466 = vdwg.mxu0
    %v467 = vadd.f32 %v370, %v459
    %v468 = vadd.f32 %v371, %v464
    %469 = vst [vmem:[%s369] sm:$0xff] %v467
    %470 = vst [vmem:[%s369 + $0x8] sm:$0xff] %v468
    // Predicated region
    $region30: #{tpu_custom_call.1} parent=1 // pred_check
      %p471 = pneg %p54
    $region31: #{tpu_custom_call.1} parent=1 // pred_check_branch
      %473 = sbr.rel (%p471) target = $region33
    $region32: #{tpu_custom_call.1} parent=1 // pred_region
      %v474 = vld [vmem:[#allocation2] sm:$0xff]
      %v475 = vld [vmem:[#allocation2 + $0x8] sm:$0xff]
      %s476 = sld [smem:[#allocation3]]
      %v477 = vstv %s476
      %v478 = vmul.f32 %v474, %v477
      %v479 = vmul.f32 %v475, %v477
      %v480 = vld [vmem:[%s165] sm:$0xff]
      %v481 = vld [vmem:[%s165 + $0x8] sm:$0xff]
      %s482 = sld [smem:[#allocation3 + $0x1]]
      %v483 = vstv %s482
      %v484 = vmul.f32 %v480, %v483
      %v485 = vmul.f32 %v481, %v483
      %v486 = vadd.f32 %v478, %v484
      %v487 = vadd.f32 %v479, %v485
      %v488 = vld [vmem:[%s267] sm:$0xff]
      %v489 = vld [vmem:[%s267 + $0x8] sm:$0xff]
      %s490 = sld [smem:[#allocation3 + $0x2]]
      %v491 = vstv %s490
      %v492 = vmul.f32 %v488, %v491
      %v493 = vmul.f32 %v489, %v491
      %v494 = vadd.f32 %v486, %v492
      %v495 = vadd.f32 %v487, %v493
      %v496 = vld [vmem:[%s369] sm:$0xff]
      %v497 = vld [vmem:[%s369 + $0x8] sm:$0xff]
      %s498 = sld [smem:[#allocation3 + $0x3]]
      %v499 = vstv %s498
      %v500 = vmul.f32 %v496, %v499
      %v501 = vmul.f32 %v497, %v499
      %v502 = vadd.f32 %v494, %v500
      %v503 = vadd.f32 %v495, %v501
      %504 = vst [vmem:[#allocation10] sm:$0xff] %v502
      %505 = vst [vmem:[#allocation10 + $0x8] sm:$0xff] %v503
      %v506 = vld [vmem:[#allocation2] sm:$0xff]
      %v507 = vld [vmem:[#allocation2 + $0x8] sm:$0xff]
      %s508 = sld [smem:[#allocation3 + $0x80]]
      %v509 = vstv %s508
      %v510 = vmul.f32 %v506, %v509
      %v511 = vmul.f32 %v507, %v509
      %v512 = vld [vmem:[%s165] sm:$0xff]
      %v513 = vld [vmem:[%s165 + $0x8] sm:$0xff]
      %s514 = sld [smem:[#allocation3 + $0x81]]
      %v515 = vstv %s514
      %v516 = vmul.f32 %v512, %v515
      %v517 = vmul.f32 %v513, %v515
      %v518 = vadd.f32 %v510, %v516
      %v519 = vadd.f32 %v511, %v517
      %v520 = vld [vmem:[%s267] sm:$0xff]
      %v521 = vld [vmem:[%s267 + $0x8] sm:$0xff]
      %s522 = sld [smem:[#allocation3 + $0x82]]
      %v523 = vstv %s522
      %v524 = vmul.f32 %v520, %v523
      %v525 = vmul.f32 %v521, %v523
      %v526 = vadd.f32 %v518, %v524
      %v527 = vadd.f32 %v519, %v525
      %v528 = vld [vmem:[%s369] sm:$0xff]
      %v529 = vld [vmem:[%s369 + $0x8] sm:$0xff]
      %s530 = sld [smem:[#allocation3 + $0x83]]
      %v531 = vstv %s530
      %v532 = vmul.f32 %v528, %v531
      %v533 = vmul.f32 %v529, %v531
      %v534 = vadd.f32 %v526, %v532
      %v535 = vadd.f32 %v527, %v533
      %s536 = scalar_lea.vmem [#allocation10], 16
      %537 = vst [vmem:[%s536] sm:$0xff] %v534
      %538 = vst [vmem:[%s536 + $0x8] sm:$0xff] %v535
      %v539 = vld [vmem:[#allocation2] sm:$0xff]
      %v540 = vld [vmem:[#allocation2 + $0x8] sm:$0xff]
      %s541 = sld [smem:[#allocation3 + $0x100]]
      %v542 = vstv %s541
      %v543 = vmul.f32 %v539, %v542
      %v544 = vmul.f32 %v540, %v542
      %v545 = vld [vmem:[%s165] sm:$0xff]
      %v546 = vld [vmem:[%s165 + $0x8] sm:$0xff]
      %s547 = sld [smem:[#allocation3 + $0x101]]
      %v548 = vstv %s547
      %v549 = vmul.f32 %v545, %v548
      %v550 = vmul.f32 %v546, %v548
      %v551 = vadd.f32 %v543, %v549
      %v552 = vadd.f32 %v544, %v550
      %v553 = vld [vmem:[%s267] sm:$0xff]
      %v554 = vld [vmem:[%s267 + $0x8] sm:$0xff]
      %s555 = sld [smem:[#allocation3 + $0x102]]
      %v556 = vstv %s555
      %v557 = vmul.f32 %v553, %v556
      %v558 = vmul.f32 %v554, %v556
      %v559 = vadd.f32 %v551, %v557
      %v560 = vadd.f32 %v552, %v558
      %v561 = vld [vmem:[%s369] sm:$0xff]
      %v562 = vld [vmem:[%s369 + $0x8] sm:$0xff]
      %s563 = sld [smem:[#allocation3 + $0x103]]
      %v564 = vstv %s563
      %v565 = vmul.f32 %v561, %v564
      %v566 = vmul.f32 %v562, %v564
      %v567 = vadd.f32 %v559, %v565
      %v568 = vadd.f32 %v560, %v566
      %s569 = scalar_lea.vmem [#allocation10], 32
      %570 = vst [vmem:[%s569] sm:$0xff] %v567
      %571 = vst [vmem:[%s569 + $0x8] sm:$0xff] %v568
      %v572 = vld [vmem:[#allocation2] sm:$0xff]
      %v573 = vld [vmem:[#allocation2 + $0x8] sm:$0xff]
      %s574 = sld [smem:[#allocation3 + $0x180]]
      %v575 = vstv %s574
      %v576 = vmul.f32 %v572, %v575
      %v577 = vmul.f32 %v573, %v575
      %v578 = vld [vmem:[%s165] sm:$0xff]
      %v579 = vld [vmem:[%s165 + $0x8] sm:$0xff]
      %s580 = sld [smem:[#allocation3 + $0x181]]
      %v581 = vstv %s580
      %v582 = vmul.f32 %v578, %v581
      %v583 = vmul.f32 %v579, %v581
      %v584 = vadd.f32 %v576, %v582
      %v585 = vadd.f32 %v577, %v583
      %v586 = vld [vmem:[%s267] sm:$0xff]
      %v587 = vld [vmem:[%s267 + $0x8] sm:$0xff]
      %s588 = sld [smem:[#allocation3 + $0x182]]
      %v589 = vstv %s588
      %v590 = vmul.f32 %v586, %v589
      %v591 = vmul.f32 %v587, %v589
      %v592 = vadd.f32 %v584, %v590
      %v593 = vadd.f32 %v585, %v591
      %v594 = vld [vmem:[%s369] sm:$0xff]
      %v595 = vld [vmem:[%s369 + $0x8] sm:$0xff]
      %s596 = sld [smem:[#allocation3 + $0x183]]
      %v597 = vstv %s596
      %v598 = vmul.f32 %v594, %v597
      %v599 = vmul.f32 %v595, %v597
      %v600 = vadd.f32 %v592, %v598
      %v601 = vadd.f32 %v593, %v599
      %s602 = scalar_lea.vmem [#allocation10], 48
      %603 = vst [vmem:[%s602] sm:$0xff] %v600
      %604 = vst [vmem:[%s602 + $0x8] sm:$0xff] %v601
    $region33: #{tpu_custom_call.1} parent=1 // pred_fallthru
      _
    // Predicated region
    $region34: #{tpu_custom_call.1} parent=1 // pred_check
      _
    $region35: #{tpu_custom_call.1} parent=1 // pred_check_branch
      %606 = sbr.rel (0) target = $region37
    $region36: #{tpu_custom_call.1} parent=1 // pred_region
      %s608 = ssub.s32 1024, 1024
      %609 = vsyncadd [#allocation5], %s608
      %s610 = sshll.u32 [#allocation10], 4
      %s611 = int_to_ptr.vmem [resolvable:$true] %s610
      %616 = dma.vmem_to_hbm [thread:$0]  %s611, 1024, %s3, [#allocation5], 128, 128, 8
    $region37: #{tpu_custom_call.1} parent=1 // pred_fallthru
      _
    // Predicated region
    $region38: #{tpu_custom_call.1} parent=1 // pred_check
      _
    $region39: #{tpu_custom_call.1} parent=1 // pred_check_branch
      %618 = sbr.rel (0) target = $region41
    $region40: #{tpu_custom_call.1} parent=1 // pred_region
      %619 = dma.done [#allocation5], 1024
    $region41: #{tpu_custom_call.1} parent=1 // pred_fallthru
      _
    %620 = vsyncpa [#allocation4], 1
    %621 = vsyncpa [#allocation9], 1
    %622 = vsyncpa [#allocation5], 1
    %623 = vsyncpa [#allocation6], 1

</llo_original>
